<compile_context>
chip_gen: v7x
topology: tpu7x:2x2x1
jax: 0.10.0
libtpu: 0.0.40
codegen_flags: <defaults>
</compile_context>

<pallas_src>
import functools

import jax
import jax.numpy as jnp
from jax.experimental import pallas as pl
from jax.experimental.pallas import tpu as pltpu

# ---- "cfg.CONST" style configuration (small, deterministic) -----------------
BATCH_SIZE = 2
IMG_W = 16
IMG_H = 16
N_VOX = 4

D_IN = IMG_H * IMG_W          # 256
D_OUT = N_VOX ** 3            # 64

_LANE = 128                   # lane width


def _round_up(n, m):
    return ((n + m - 1) // m) * m


D_OUT_PAD = _round_up(D_OUT, _LANE)   # 128 -> lane-dense weight/output tiles


def _net_kernel(x_ref, w_ref, b_ref, y_ref, out_ref, scal_ref, *,
                true_b, true_d_out):
    """Fused forward pass for the concrete `Net` realization.

    logits  = x @ W + b                          (MXU, f32 accumulation)
    output  = sigmoid(logits)                    (lane-dense (B, 128) store)
    loss    = mean over the true (B, D_OUT) region of
              BCE-from-logits = softplus(logits) - y * logits
    error   = mean over the true region of |1[logits > 0] - y|
    scal_ref[0] = loss, scal_ref[1] = error      (single SMEM (2,) output)
    """
    x = x_ref[...]                       # (B, D_IN)         f32
    w = w_ref[...]                       # (D_IN, D_OUT_PAD) f32
    b = b_ref[...]                       # (1, D_OUT_PAD)    f32
    y = y_ref[...]                       # (B, D_OUT_PAD)    f32 (lane-padded)

    logits = jnp.dot(x, w, preferred_element_type=jnp.float32) + b

    # Numerically stable sigmoid and softplus sharing a single exp:
    #   e = exp(-|l|);  sigmoid(l) = 1/(1+e) if l>=0 else e/(1+e)
    #   softplus(l)     = max(l, 0) + log1p(e)
    e = jnp.exp(-jnp.abs(logits))
    inv1pe = 1.0 / (1.0 + e)
    p = jnp.where(logits >= 0.0, inv1pe, e * inv1pe)     # sigmoid(logits)
    out_ref[...] = p                                     # dense (B, 128) store

    # Only the voxel (lane) dim is padded now -> single column mask, no row
    # mask / row iota.  Padded columns have logits == 0 (zero-padded W and b)
    # so they MUST be masked out of the means.
    cols = jax.lax.broadcasted_iota(jnp.int32, logits.shape, 1)
    valid_f = (cols < true_d_out).astype(jnp.float32)
    inv_count = jnp.float32(1.0 / (true_b * true_d_out))

    # BCE directly from logits (no eps clamp needed; stable when saturated).
    softplus = jnp.maximum(logits, 0.0) + jnp.log1p(e)
    bce = softplus - y * logits
    scal_ref[0] = jnp.sum(bce * valid_f) * inv_count

    # logits > 0  <=>  sigmoid(logits) > 0.5 ; independent of the EUP sigmoid.
    pred = (logits > 0.0).astype(jnp.float32)
    scal_ref[1] = jnp.sum(jnp.abs(pred - y) * valid_f) * inv_count


def pad_params(w, b):
    """One-time parameter padding (hoisted out of the per-call hot path)."""
    d_out = w.shape[1]
    w_p = jnp.pad(w, ((0, 0), (0, D_OUT_PAD - d_out)))
    b_p = jnp.pad(b.reshape(1, d_out), ((0, 0), (0, D_OUT_PAD - d_out)))
    return w_p, b_p


@jax.jit
def net_forward(x_nchw, y_vox, w_p, b_p):
    """x_nchw: (B, 1, IMG_H, IMG_W) f32, y_vox: (B, N_VOX, N_VOX, N_VOX) f32,
    w_p: (D_IN, D_OUT_PAD) f32, b_p: (1, D_OUT_PAD) f32  (pre-padded params).
    Returns (output (B, N_VOX, N_VOX, N_VOX), loss scalar, error scalar)."""
    batch = x_nchw.shape[0]
    n_vox = y_vox.shape[1]
    d_in = x_nchw.shape[-2] * x_nchw.shape[-1]
    d_out = n_vox ** 3
    d_out_pad = w_p.shape[1]

    # Minimal wrapper: two reshapes + one lane-pad of y. No batch padding
    # (full-extent blocks are exempt from the (8,128) rule), no weight pad.
    x_flat = x_nchw.reshape(batch, d_in)                    # (B, 256)
    y_p = jnp.pad(y_vox.reshape(batch, d_out),
                  ((0, 0), (0, d_out_pad - d_out)))         # (B, 128)

    vmem = pl.BlockSpec(memory_space=pltpu.MemorySpace.VMEM)
    smem = pl.BlockSpec(memory_space=pltpu.MemorySpace.SMEM)

    kernel = functools.partial(_net_kernel, true_b=batch, true_d_out=d_out)
    out_p, scal = pl.pallas_call(
        kernel,
        out_shape=(
            jax.ShapeDtypeStruct((batch, d_out_pad), jnp.float32),
            jax.ShapeDtypeStruct((2,), jnp.float32),
        ),
        in_specs=[vmem, vmem, vmem, vmem],
        out_specs=(vmem, smem),
    )(x_flat, w_p, b_p, y_p)

    output = out_p[:, :d_out].reshape(batch, n_vox, n_vox, n_vox)
    return output, scal[0], scal[1]


if __name__ == "__main__":
    key = jax.random.PRNGKey(0)
    k_x, k_y, k_w, k_b = jax.random.split(key, 4)

    # deterministic synthetic parameters (linear layer D_IN -> D_OUT),
    # lane-padded ONCE at init time.
    w = jax.random.normal(k_w, (D_IN, D_OUT), jnp.float32) * 0.05
    b = jax.random.normal(k_b, (D_OUT,), jnp.float32) * 0.01
    w_p, b_p = pad_params(w, b)

    # deterministic example inputs
    x = jax.random.normal(k_x, (BATCH_SIZE, 1, IMG_H, IMG_W), jnp.float32)
    y = (jax.random.uniform(k_y, (BATCH_SIZE, N_VOX, N_VOX, N_VOX)) > 0.5
         ).astype(jnp.float32)

    output, loss, error = net_forward(x, y, w_p, b_p)
    jax.block_until_ready((output, loss, error))

    assert output.shape == (BATCH_SIZE, N_VOX, N_VOX, N_VOX)
    assert bool(jnp.isfinite(loss)) and bool(jnp.isfinite(error))
    print("KERNEL_OK")
</pallas_src>

<mosaic_0001>
module attributes {stable_mosaic.version = 11 : i64} {
  func.func @_net_kernel(%arg0: memref<2x256xf32, #tpu.memory_space<vmem>>, %arg1: memref<256x128xf32, #tpu.memory_space<vmem>>, %arg2: memref<1x128xf32, #tpu.memory_space<vmem>>, %arg3: memref<2x128xf32, #tpu.memory_space<vmem>>, %arg4: memref<2x128xf32, #tpu.memory_space<vmem>>, %arg5: memref<2xf32, #tpu.memory_space<smem>>) attributes {dimension_semantics = [], scalar_prefetch = 0 : i64, scratch_operands = 0 : i64, tpu.core_type = #tpu.core_type<tc>} {
    %c0 = arith.constant 0 : index
    %c0_0 = arith.constant 0 : index
    %0 = vector.load %arg0[%c0, %c0_0] : memref<2x256xf32, #tpu.memory_space<vmem>>, vector<2x256xf32>
    %c0_1 = arith.constant 0 : index
    %c0_2 = arith.constant 0 : index
    %1 = vector.load %arg1[%c0_1, %c0_2] : memref<256x128xf32, #tpu.memory_space<vmem>>, vector<256x128xf32>
    %c0_3 = arith.constant 0 : index
    %c0_4 = arith.constant 0 : index
    %2 = vector.load %arg2[%c0_3, %c0_4] : memref<1x128xf32, #tpu.memory_space<vmem>>, vector<1x128xf32>
    %c0_5 = arith.constant 0 : index
    %c0_6 = arith.constant 0 : index
    %3 = vector.load %arg3[%c0_5, %c0_6] : memref<2x128xf32, #tpu.memory_space<vmem>>, vector<2x128xf32>
    %cst = arith.constant dense<0.000000e+00> : vector<2x128xf32>
    %4 = tpu.matmul %0, %1, %cst {dimension_numbers = #tpu.dot_dimension_numbers<[1], [0], [0], [1], [0, 0, 1, 1], [], []>} : vector<2x256xf32>, vector<256x128xf32>, vector<2x128xf32> -> vector<2x128xf32>
    %5 = vector.broadcast %2 : vector<1x128xf32> to vector<2x128xf32>
    %6 = arith.addf %4, %5 : vector<2x128xf32>
    %7 = math.absf %6 : vector<2x128xf32>
    %cst_7 = arith.constant 0.000000e+00 : f32
    %8 = vector.broadcast %cst_7 : f32 to vector<2x128xf32>
    %9 = arith.subf %8, %7 : vector<2x128xf32>
    %10 = math.exp %9 : vector<2x128xf32>
    %cst_8 = arith.constant 1.000000e+00 : f32
    %11 = vector.broadcast %cst_8 : f32 to vector<2x128xf32>
    %12 = arith.addf %11, %10 : vector<2x128xf32>
    %cst_9 = arith.constant 1.000000e+00 : f32
    %13 = vector.broadcast %cst_9 : f32 to vector<2x128xf32>
    %14 = arith.divf %13, %12 : vector<2x128xf32>
    %cst_10 = arith.constant 0.000000e+00 : f32
    %15 = vector.broadcast %cst_10 : f32 to vector<2x128xf32>
    %16 = arith.cmpf oge, %6, %15 : vector<2x128xf32>
    %17 = arith.mulf %10, %14 : vector<2x128xf32>
    %18 = arith.select %16, %14, %17 : vector<2x128xi1>, vector<2x128xf32>
    %c0_11 = arith.constant 0 : index
    %c0_12 = arith.constant 0 : index
    %19 = vector.load %arg4[%c0_11, %c0_12] : memref<2x128xf32, #tpu.memory_space<vmem>>, vector<2x128xf32>
    tpu.vector_store %arg4[%c0_11, %c0_12], %18 {strides = array<i32>} : memref<2x128xf32, #tpu.memory_space<vmem>>, vector<2x128xf32>,
    %20 = tpu.iota {dimensions = array<i32: 1>} : vector<2x128xi32>
    %c64_i32 = arith.constant 64 : i32
    %21 = vector.broadcast %c64_i32 : i32 to vector<2x128xi32>
    %22 = arith.cmpi slt, %20, %21 : vector<2x128xi32>
    %23 = arith.extui %22 : vector<2x128xi1> to vector<2x128xi32>
    %24 = arith.sitofp %23 : vector<2x128xi32> to vector<2x128xf32>
    %cst_13 = arith.constant 0.000000e+00 : f32
    %25 = vector.broadcast %cst_13 : f32 to vector<2x128xf32>
    %26 = arith.maximumf %6, %25 : vector<2x128xf32>
    %27 = math.log1p %10 : vector<2x128xf32>
    %28 = arith.addf %26, %27 : vector<2x128xf32>
    %29 = arith.mulf %3, %6 : vector<2x128xf32>
    %30 = arith.subf %28, %29 : vector<2x128xf32>
    %31 = arith.mulf %30, %24 : vector<2x128xf32>
    %32 = vector.shape_cast %31 : vector<2x128xf32> to vector<1x2x128xf32>
    %cst_14 = arith.constant dense<0.000000e+00> : vector<1xf32>
    %33 = vector.multi_reduction <add>, %32, %cst_14 [1, 2] : vector<1x2x128xf32> to vector<1xf32>
    %34 = vector.shape_cast %33 : vector<1xf32> to vector<1x1x1xf32>
    %35 = vector.extract %34[0, 0, 0] : f32 from vector<1x1x1xf32>
    %cst_15 = arith.constant 7.812500e-03 : f32
    %36 = arith.mulf %35, %cst_15 : f32
    %c0_16 = arith.constant 0 : index
    %37 = memref.load %arg5[%c0_16] : memref<2xf32, #tpu.memory_space<smem>>
    memref.store %36, %arg5[%c0_16] : memref<2xf32, #tpu.memory_space<smem>>
    %cst_17 = arith.constant 0.000000e+00 : f32
    %38 = vector.broadcast %cst_17 : f32 to vector<2x128xf32>
    %39 = arith.cmpf ogt, %6, %38 : vector<2x128xf32>
    %40 = arith.extui %39 : vector<2x128xi1> to vector<2x128xi32>
    %41 = arith.sitofp %40 : vector<2x128xi32> to vector<2x128xf32>
    %42 = arith.subf %41, %3 : vector<2x128xf32>
    %43 = math.absf %42 : vector<2x128xf32>
    %44 = arith.mulf %43, %24 : vector<2x128xf32>
    %45 = vector.shape_cast %44 : vector<2x128xf32> to vector<1x2x128xf32>
    %cst_18 = arith.constant dense<0.000000e+00> : vector<1xf32>
    %46 = vector.multi_reduction <add>, %45, %cst_18 [1, 2] : vector<1x2x128xf32> to vector<1xf32>
    %47 = vector.shape_cast %46 : vector<1xf32> to vector<1x1x1xf32>
    %48 = vector.extract %47[0, 0, 0] : f32 from vector<1x1x1xf32>
    %cst_19 = arith.constant 7.812500e-03 : f32
    %49 = arith.mulf %48, %cst_19 : f32
    %c1 = arith.constant 1 : index
    %50 = memref.load %arg5[%c1] : memref<2xf32, #tpu.memory_space<smem>>
    memref.store %49, %arg5[%c1] : memref<2xf32, #tpu.memory_space<smem>>
    return
  }
}

</mosaic_0001>

<llo_original>
// kernel: net_forward.1
$region0: #{net_forward.1}
  #allocation0 [shape = 'u32[]', space=smem, size = 0x4, offset = 0x4, fixed_abs, tag = 'smem constant byte address 0x4 - core index']
  #allocation1 [shape = 'u32[144,128]{1,0:T(1,128)}', space=vmem, size = 0x12000, scoped, tag = 'internal scratch']
  %s0 = inlined_call_operand.vmem [shape: f32[2,256], index: 0, kind: input, shape index: {}]
  %s1 = inlined_call_operand.hbm [shape: f32[256,128], index: 1, kind: input, shape index: {}]
  %s2 = inlined_call_operand.vmem [shape: f32[1,128], index: 2, kind: input, shape index: {}]
  %s3 = inlined_call_operand.vmem [shape: f32[2,128], index: 3, kind: input, shape index: {}]
  %s4 = inlined_call_operand.vmem [shape: f32[2,128], index: 4, kind: output, shape index: {0}]
  %s5 = inlined_call_operand.vmem [shape: f32[2], index: 5, kind: output, shape index: {1}]
  %6 = xla_tuple %s4, %s5
  %s7 = sld [smem:[#allocation0]]
  $region38: #{net_forward.1} parent=0
    _
  %s9 = ssub.s32 1, %s7
  %s10 = scalar_select 0, %s9, %s7
  $region1: #{net_forward.1} parent=0
    #allocation2 [shape = 'u8[131072]{0}', space=vmem, size = 0x20000, scoped, tag = 'input window, operand 1, single buffered']
    #allocation3 [shape = 's32[1]{0}', space=sflag, size = 0x4, scoped, tag = 'scoped memory for net_forward.1']
    #allocation4 [shape = 's32[1]{0}', space=sflag, size = 0x4, scoped, tag = 'scoped memory for net_forward.1']
    #allocation5 [shape = 'u8[512]{0}', space=smem, size = 0x200, scoped, tag = 'output window, operand 1, single buffered']
    %11 = vsyncpa [#allocation3], 0
    %12 = vsyncpa [#allocation4], 0
    // Predicated region
    $region2: #{net_forward.1} parent=1 // pred_check
      _
    $region3: #{net_forward.1} parent=1 // pred_check_branch
      %14 = sbr.rel (0) target = $region5
    $region4: #{net_forward.1} parent=1 // pred_region
      _
    $region5: #{net_forward.1} parent=1 // pred_fallthru
      _
    // Predicated region
    $region6: #{net_forward.1} parent=1 // pred_check
      _
    $region7: #{net_forward.1} parent=1 // pred_check_branch
      %16 = sbr.rel (0) target = $region9
    $region8: #{net_forward.1} parent=1 // pred_region
      %s18 = ssub.s32 4096, 4096
      %19 = vsyncadd [#allocation3], %s18
      %s20 = sshll.u32 [#allocation2], 4
      %s21 = int_to_ptr.vmem [resolvable:$true] %s20
      %26 = dma.hbm_to_vmem [thread:$0]  %s1, 4096, %s21, [#allocation3], 128, 128, 8
    $region9: #{net_forward.1} parent=1 // pred_fallthru
      _
    // Predicated region
    $region10: #{net_forward.1} parent=1 // pred_check
      _
    $region11: #{net_forward.1} parent=1 // pred_check_branch
      %28 = sbr.rel (0) target = $region13
    $region12: #{net_forward.1} parent=1 // pred_region
      _
    $region13: #{net_forward.1} parent=1 // pred_fallthru
      _
    // Predicated region
    $region14: #{net_forward.1} parent=1 // pred_check
      _
    $region15: #{net_forward.1} parent=1 // pred_check_branch
      %30 = sbr.rel (0) target = $region17
    $region16: #{net_forward.1} parent=1 // pred_region
      _
    $region17: #{net_forward.1} parent=1 // pred_fallthru
      _
    // Predicated region
    $region18: #{net_forward.1} parent=1 // pred_check
      _
    $region19: #{net_forward.1} parent=1 // pred_check_branch
      %32 = sbr.rel (0) target = $region21
    $region20: #{net_forward.1} parent=1 // pred_region
      %33 = dma.done [#allocation3], 4096
    $region21: #{net_forward.1} parent=1 // pred_fallthru
      _
    %v34 = vld [vmem:[%s0] sm:$0xf]
    %v35 = vld [vmem:[#allocation2] sm:$0xff]
    %v36 = vld [vmem:[#allocation2 + $0x8] sm:$0xff]
    %v37 = vld [vmem:[#allocation2 + $0x10] sm:$0xff]
    %v38 = vld [vmem:[#allocation2 + $0x18] sm:$0xff]
    %v39 = vld [vmem:[#allocation2 + $0x20] sm:$0xff]
    %v40 = vld [vmem:[#allocation2 + $0x28] sm:$0xff]
    %v41 = vld [vmem:[#allocation2 + $0x30] sm:$0xff]
    %v42 = vld [vmem:[#allocation2 + $0x38] sm:$0xff]
    %v43 = vld [vmem:[#allocation2 + $0x40] sm:$0xff]
    %v44 = vld [vmem:[#allocation2 + $0x48] sm:$0xff]
    %v45 = vld [vmem:[#allocation2 + $0x50] sm:$0xff]
    %v46 = vld [vmem:[#allocation2 + $0x58] sm:$0xff]
    %v47 = vld [vmem:[#allocation2 + $0x60] sm:$0xff]
    %v48 = vld [vmem:[#allocation2 + $0x68] sm:$0xff]
    %v49 = vld [vmem:[#allocation2 + $0x70] sm:$0xff]
    %v50 = vld [vmem:[#allocation2 + $0x78] sm:$0xff]
    %v51 = vld [vmem:[#allocation2 + $0x80] sm:$0xff]
    %v52 = vld [vmem:[#allocation2 + $0x88] sm:$0xff]
    %v53 = vld [vmem:[#allocation2 + $0x90] sm:$0xff]
    %v54 = vld [vmem:[#allocation2 + $0x98] sm:$0xff]
    %v55 = vld [vmem:[#allocation2 + $0xa0] sm:$0xff]
    %v56 = vld [vmem:[#allocation2 + $0xa8] sm:$0xff]
    %v57 = vld [vmem:[#allocation2 + $0xb0] sm:$0xff]
    %v58 = vld [vmem:[#allocation2 + $0xb8] sm:$0xff]
    %v59 = vld [vmem:[#allocation2 + $0xc0] sm:$0xff]
    %v60 = vld [vmem:[#allocation2 + $0xc8] sm:$0xff]
    %v61 = vld [vmem:[#allocation2 + $0xd0] sm:$0xff]
    %v62 = vld [vmem:[#allocation2 + $0xd8] sm:$0xff]
    %v63 = vld [vmem:[#allocation2 + $0xe0] sm:$0xff]
    %v64 = vld [vmem:[#allocation2 + $0xe8] sm:$0xff]
    %v65 = vld [vmem:[#allocation2 + $0xf0] sm:$0xff]
    %v66 = vld [vmem:[#allocation2 + $0xf8] sm:$0xff]
    %v67 = vld [vmem:[%s2] sm:$0x1]
    %v68 = vld [vmem:[%s3] sm:$0x3]
    %v70 = vlaneseq
    %v71 = vshrl.u32 %v70, 7
    %v72 = vsub.s32 0, %v71
    %v73 = vrot.slane %v67, %v72
    %v77 = vunpack.c.l.s4 1983009808
    %v78 = vunpack.c.0.s8 %v77
    %v79 = vlaneseq
    %v80 = vshrl.u32 %v79, 7
    %v81 = vsub.s32 %v78, %v80
    %v82 = vrot.slane %v34, %v81
    %v83 = vcombine.high %v82, %v82
    %86 = vmatprep.subr.mxu0 0.0
    %87 = vmatpush1.msra.mxu0 %v35
    %88 = vmatprep.subr.mxu0 0.0
    %89 = vmatpush1.msra.mxu0 %v36
    %90 = vmatprep.subr.mxu0 0.0
    %91 = vmatpush1.msra.mxu0 %v37
    %92 = vmatprep.subr.mxu0 0.0
    %93 = vmatpush1.msra.mxu0 %v38
    %94 = vmatprep.subr.mxu0 0.0
    %95 = vmatpush1.msra.mxu0 %v39
    %96 = vmatprep.subr.mxu0 0.0
    %97 = vmatpush1.msra.mxu0 %v40
    %98 = vmatprep.subr.mxu0 0.0
    %99 = vmatpush1.msra.mxu0 %v41
    %100 = vmatprep.subr.mxu0 0.0
    %101 = vmatpush1.msra.mxu0 %v42
    %102 = vmatprep.subr.mxu0 0.0
    %103 = vmatpush1.msra.mxu0 %v43
    %104 = vmatprep.subr.mxu0 0.0
    %105 = vmatpush1.msra.mxu0 %v44
    %106 = vmatprep.subr.mxu0 0.0
    %107 = vmatpush1.msra.mxu0 %v45
    %108 = vmatprep.subr.mxu0 0.0
    %109 = vmatpush1.msra.mxu0 %v46
    %110 = vmatprep.subr.mxu0 0.0
    %111 = vmatpush1.msra.mxu0 %v47
    %112 = vmatprep.subr.mxu0 0.0
    %113 = vmatpush1.msra.mxu0 %v48
    %114 = vmatprep.subr.mxu0 0.0
    %115 = vmatpush1.msra.mxu0 %v49
    %116 = vmatprep.subr.mxu0 0.0
    %117 = vmatpush1.msra.mxu0 %v50
    %118 = vmatprep.subr.mxu0 0.0
    %119 = vmatpush1.msra.mxu0 %v51
    %120 = vmatprep.subr.mxu0 0.0
    %121 = vmatpush1.msra.mxu0 %v52
    %122 = vmatprep.subr.mxu0 0.0
    %123 = vmatpush1.msra.mxu0 %v53
    %124 = vmatprep.subr.mxu0 0.0
    %125 = vmatpush1.msra.mxu0 %v54
    %126 = vmatprep.subr.mxu0 0.0
    %127 = vmatpush1.msra.mxu0 %v55
    %128 = vmatprep.subr.mxu0 0.0
    %129 = vmatpush1.msra.mxu0 %v56
    %130 = vmatprep.subr.mxu0 0.0
    %131 = vmatpush1.msra.mxu0 %v57
    %132 = vmatprep.subr.mxu0 0.0
    %133 = vmatpush1.msra.mxu0 %v58
    %134 = vmatprep.subr.mxu0 0.0
    %135 = vmatpush1.msra.mxu0 %v59
    %136 = vmatprep.subr.mxu0 0.0
    %137 = vmatpush1.msra.mxu0 %v60
    %138 = vmatprep.subr.mxu0 0.0
    %139 = vmatpush1.msra.mxu0 %v61
    %140 = vmatprep.subr.mxu0 0.0
    %141 = vmatpush1.msra.mxu0 %v62
    %142 = vmatprep.subr.mxu0 0.0
    %143 = vmatpush1.msra.mxu0 %v63
    %144 = vmatprep.subr.mxu0 0.0
    %145 = vmatpush1.msra.mxu0 %v64
    %146 = vmatprep.subr.mxu0 0.0
    %147 = vmatpush1.msra.mxu0 %v65
    %148 = vmatprep.subr.mxu0 0.0
    %149 = vmatpush1.msra.mxu0 %v66
    %150 = vmatprep.mubr.f32.mxu0 %v83
    %151 = vmatmul.mubr.f32.gmra.mrb[0].mxu0 %v82
    %v152 = vpop.f32.mrb[0].mxu0
    %v153 = vadd.f32 %v73, %v152
    %v154 = vpop.f32.mrb[0].mxu0
    %155 = vdwg.mxu0
    %v156 = vand.u32 2147483647, %v153
    %v157 = vsub.f32 0.0, %v156
    %v158 = vmul.f32 %v157, 1.442695
    %v159 = vpow.pop %v158
    %v160 = vadd.f32 %v159, 1.0
    %v161 = vrcp.pop %v160
    %v162 = vmul.f32 1.0, %v161
    %vm163 = vcmp.ge.f32.partialorder %v153, 0.0
    %v164 = vmul.f32 %v159, %v162
    %v165 = vsel %vm163, %v162, %v164
    %166 = vst [vmem:[%s4] sm:$0x3] %v165
    %v167 = vlaneseq
    %v168 = vand.u32 %v167, 127
    %vm169 = vcmp.lt.s32.totalorder %v168, 64
    %v170 = vsel %vm169, 1, 0
    %v171 = vcvt.s32.f32 %v170
    %v172 = vmax.f32 %v153, 0.0
    %v173 = vadd.f32 %v159, 1.0
    %v174 = vlog2.pop %v173
    %v175 = vmul.f32 %v174, 0.6931472
    %v176 = vmul.f32 -0.5, %v159
    %v177 = vadd.f32 %v176, 1.0
    %v178 = vmul.f32 %v177, %v159
    %v179 = vand.u32 2147483647, %v159
    %vm180 = vcmp.lt.f32.partialorder %v179, 0.0004427343
    %v181 = vsel %vm180, %v178, %v175
    %v182 = vadd.f32 %v172, %v181
    %v183 = vmul.f32 %v68, %v153
    %v184 = vsub.f32 %v182, %v183
    %v185 = vmul.f32 %v184, %v171
    %vm186 = vcmask 1041408
    %v187 = vsel %vm186, %v185, 0.0
    %188 = vadd.xlane.f32.xlu0 %v187
    %v189 = vpop.xlane.xlu0 %188
    %v190 = vrot.slane %v189, 4
    %v191 = vadd.f32 %v189, %v190
    %v192 = vrot.slane %v191, 2
    %v193 = vadd.f32 %v191, %v192
    %v194 = vrot.slane %v193, 1
    %v195 = vadd.f32 %v193, %v194
    %s196 = vtos %v195
    %s197 = smul.f32 %s196, 0.0078125
    %s198 = scalar_lea.smem [#allocation5], 0
    %199 = sst [smem:[%s198]] %s197
    %vm200 = vcmp.gt.f32.partialorder %v153, 0.0
    %v201 = vsel %vm200, 1, 0
    %v202 = vcvt.s32.f32 %v201
    %v203 = vsub.f32 %v202, %v68
    %v204 = vand.u32 2147483647, %v203
    %v205 = vmul.f32 %v204, %v171
    %v206 = vsel %vm186, %v205, 0.0
    %207 = vadd.xlane.f32.xlu0 %v206
    %v208 = vpop.xlane.xlu0 %207
    %v209 = vrot.slane %v208, 4
    %v210 = vadd.f32 %v208, %v209
    %v211 = vrot.slane %v210, 2
    %v212 = vadd.f32 %v210, %v211
    %v213 = vrot.slane %v212, 1
    %v214 = vadd.f32 %v212, %v213
    %s215 = vtos %v214
    %s216 = smul.f32 %s215, 0.0078125
    %s217 = scalar_lea.smem [#allocation5], 1
    %218 = sst [smem:[%s217]] %s216
    // Predicated region
    $region22: #{net_forward.1} parent=1 // pred_check
      _
    $region23: #{net_forward.1} parent=1 // pred_check_branch
      %220 = sbr.rel (0) target = $region25
    $region24: #{net_forward.1} parent=1 // pred_region
      _
    $region25: #{net_forward.1} parent=1 // pred_fallthru
      _
    // Predicated region
    $region26: #{net_forward.1} parent=1 // pred_check
      _
    $region27: #{net_forward.1} parent=1 // pred_check_branch
      %222 = sbr.rel (0) target = $region29
    $region28: #{net_forward.1} parent=1 // pred_region
      %s224 = ssub.s32 16, 16
      %225 = vsyncadd [#allocation4], %s224
      %s227 = sshll.u32 %s5, 4
      %s228 = int_to_ptr.vmem [resolvable:$true] %s227
      %230 = dma.smem_to_vmem [#allocation5], 16, %s228, [#allocation4]
    $region29: #{net_forward.1} parent=1 // pred_fallthru
      _
    // Predicated region
    $region30: #{net_forward.1} parent=1 // pred_check
      _
    $region31: #{net_forward.1} parent=1 // pred_check_branch
      %232 = sbr.rel (0) target = $region33
    $region32: #{net_forward.1} parent=1 // pred_region
      _
    $region33: #{net_forward.1} parent=1 // pred_fallthru
      _
    // Predicated region
    $region34: #{net_forward.1} parent=1 // pred_check
      _
    $region35: #{net_forward.1} parent=1 // pred_check_branch
      %234 = sbr.rel (0) target = $region37
    $region36: #{net_forward.1} parent=1 // pred_region
      %235 = dma.done [#allocation4], 16
    $region37: #{net_forward.1} parent=1 // pred_fallthru
      _
    %236 = sfence
    %237 = vsyncpa [#allocation3], 1
    %238 = vsyncpa [#allocation4], 1

</llo_original>
